<compile_context>
chip_gen: v7x
topology: tpu7x:2x2x1
jax: 0.10.0
libtpu: 0.0.40
codegen_flags: <defaults>
</compile_context>

<pallas_src>
import functools
import math

import jax
import jax.numpy as jnp
from jax import lax
from jax.experimental import pallas as pl
from jax.experimental.pallas import tpu as pltpu


def _round_up(x: int, m: int) -> int:
    return (x + m - 1) // m * m


def _pick_tile(total: int, preferred: int) -> int:
    """Largest of {preferred, 256, 128} that divides `total` (128-aligned)."""
    for t in (preferred, 256, 128):
        if t <= total and total % t == 0:
            return t
    return total


def _lsd_kernel(seed_ref, x_ref, w_ref, b_ref, o_ref, acc_ref, *,
                dropout_p, training):
    k = pl.program_id(2)

    @pl.when(k == 0)
    def _():
        # Seed the f32 accumulator with the broadcast bias: removes the bias
        # add from the finalize epilogue.
        acc_ref[...] = jnp.broadcast_to(
            b_ref[...].astype(jnp.float32), acc_ref.shape)

    # x: (tm, tk); weight kept in torch (out, in) layout: (tn, tk).
    # Contract both on their K (last) dim -> (tm, tn), f32 MXU accumulation.
    acc_ref[...] += lax.dot_general(
        x_ref[...], w_ref[...],
        dimension_numbers=(((1,), (1,)), ((), ())),
        preferred_element_type=jnp.float32)

    @pl.when(k == pl.num_programs(2) - 1)
    def _():
        y = acc_ref[...]
        y = y * jax.nn.sigmoid(y)                       # SiLU (EUP sigmoid)
        if training and dropout_p > 0.0:
            if dropout_p >= 1.0:
                y = jnp.zeros_like(y)                   # p == 1 -> all dropped
            else:
                # Inverted dropout with the stateful TPU PRNG.  Grid coords are
                # mixed into the seed by prng_seed itself (no correlated
                # adjacent-integer seed streams).
                # TODO(synk): cannot bit-match torch's dropout RNG stream.
                pltpu.prng_seed(seed_ref[0], pl.program_id(0), pl.program_id(1))
                bits = pltpu.bitcast(pltpu.prng_random_bits(y.shape),
                                     jnp.uint32)
                thresh = jnp.uint32(min(int(dropout_p * 4294967296.0),
                                        4294967295))
                keep = bits >= thresh                   # P(keep) = 1 - p
                y = jnp.where(keep, y * (1.0 / (1.0 - dropout_p)), 0.0)
        o_ref[...] = y.astype(o_ref.dtype)


def lsd_forward(x, weight, bias, *, dropout_p=0.3, training=False, seed=0,
                tm=512, tn=512, tk=512):
    """x: (..., in_size); weight: (out_size, in_size) [torch layout];
    bias: (out_size,).  Returns (..., out_size)."""
    in_size = x.shape[-1]
    out_size, w_in = weight.shape
    assert w_in == in_size
    lead = x.shape[:-1]
    m = int(math.prod(lead)) if lead else 1

    itemsize = jnp.dtype(x.dtype).itemsize
    sub = {4: 8, 2: 16, 1: 32}.get(itemsize, 8)        # dtype-aware sublane min

    # ---- M tiling ------------------------------------------------------------
    m_rounded = _round_up(m, sub)
    if m_rounded <= tm:
        tm_eff = m_rounded          # single row tile: W streams exactly once
    else:
        tm_eff = tm                 # 512: 256-aligned for v6e/v7x MXU geometry
    m_pad = _round_up(m, tm_eff)

    # ---- K tiling (avoid zero-padding K; full-dim blocks are legal) ----------
    if in_size % 128 == 0:
        k_pad = in_size
        tk_eff = _pick_tile(in_size, tk)
    elif in_size <= 4096:
        k_pad = in_size
        tk_eff = in_size            # full-dim K block, single K step, no pad
    else:                           # rare: huge, unaligned K -> pad + tile
        k_pad = _round_up(in_size, 128)
        tk_eff = _pick_tile(k_pad, tk)

    # ---- N tiling (lane-dense when aligned; never copy W if avoidable) -------
    if out_size % 128 == 0:
        n_pad = out_size
        tn_eff = _pick_tile(out_size, tn)
    elif out_size <= 512:
        n_pad = out_size
        tn_eff = out_size           # full-dim N block; no weight copy
    else:                           # large unaligned N: pay the pad once
        n_pad = _round_up(out_size, 128)
        tn_eff = _pick_tile(n_pad, tn)

    # v7x megacore: when M fits one tile, split N so both TCs get work.
    if m_pad == tm_eff and n_pad // tn_eff < 2 and n_pad % 256 == 0:
        tn_eff = n_pad // 2

    # ---- operand prep (no weight transpose; pads only when strictly needed) --
    x2 = x.reshape(m, in_size)
    if m_pad != m or k_pad != in_size:
        x2 = jnp.pad(x2, ((0, m_pad - m), (0, k_pad - in_size)))
    w = weight                                          # torch (out, in) as-is
    if n_pad != out_size or k_pad != in_size:
        w = jnp.pad(w, ((0, n_pad - out_size), (0, k_pad - in_size)))
    b2 = bias.reshape(1, out_size)
    if n_pad != out_size:
        b2 = jnp.pad(b2, ((0, 0), (0, n_pad - out_size)))
    seed_arr = jnp.asarray([seed], dtype=jnp.int32)

    grid = (m_pad // tm_eff, n_pad // tn_eff, k_pad // tk_eff)
    k_steps = grid[2]

    # Deeper input buffering only helps when there are many short K steps.
    pmode = {"pipeline_mode": pl.Buffered(3)} if k_steps > 2 else {}
    x_spec = pl.BlockSpec((tm_eff, tk_eff), lambda i, j, k, s: (i, k), **pmode)
    w_spec = pl.BlockSpec((tn_eff, tk_eff), lambda i, j, k, s: (j, k), **pmode)
    b_spec = pl.BlockSpec((1, tn_eff), lambda i, j, k, s: (0, j))
    o_spec = pl.BlockSpec((tm_eff, tn_eff), lambda i, j, k, s: (i, j))

    # VMEM budget: buffered x/W panels + double-buffered out + f32 accumulator.
    bufs = 3 if k_steps > 2 else 2
    est = ((bufs * (tm_eff * tk_eff + tn_eff * tk_eff)
            + 2 * tm_eff * tn_eff + 2 * tn_eff) * itemsize
           + tm_eff * tn_eff * 4)
    vmem_limit = None
    if est > 12 * 1024 * 1024:                          # exceeds v5e default
        vmem_limit = int(min(est * 3 // 2, 64 * 1024 * 1024))   # v7x physical

    kernel = functools.partial(_lsd_kernel, dropout_p=float(dropout_p),
                               training=bool(training))

    out = pl.pallas_call(
        kernel,
        out_shape=jax.ShapeDtypeStruct((m_pad, n_pad), x.dtype),
        grid_spec=pltpu.PrefetchScalarGridSpec(
            num_scalar_prefetch=1,                      # seed lands in SMEM
            grid=grid,
            in_specs=[x_spec, w_spec, b_spec],
            out_specs=o_spec,
            scratch_shapes=[pltpu.VMEM((tm_eff, tn_eff), jnp.float32)],
        ),
        compiler_params=pltpu.CompilerParams(
            dimension_semantics=("parallel", "parallel", "arbitrary"),
            vmem_limit_bytes=vmem_limit),
    )(seed_arr, x2, w, b2)

    out = out[:m, :out_size]
    return out.reshape(*lead, out_size)


if __name__ == "__main__":
    input_size = 32
    output_size = 64
    batch, seq = 2, 8

    key = jax.random.PRNGKey(0)
    kx, kw, kb = jax.random.split(key, 3)

    # Deterministic params (matches torch.nn.Linear's U(-1/sqrt(in), 1/sqrt(in))).
    bound = 1.0 / (input_size ** 0.5)
    weight = jax.random.uniform(kw, (output_size, input_size), jnp.float32,
                                -bound, bound)
    bias = jax.random.uniform(kb, (output_size,), jnp.float32, -bound, bound)
    x = jax.random.normal(kx, (batch, seq, input_size), jnp.float32)

    # Eval-mode forward (dropout = identity), matching module.eval() semantics.
    y = lsd_forward(x, weight, bias, dropout_p=0.3, training=False)
    y = jax.block_until_ready(y)

    # Sanity check against a pure-JAX reference.
    ref = x @ weight.T + bias
    ref = ref * jax.nn.sigmoid(ref)
    assert y.shape == (batch, seq, output_size)
    assert jnp.allclose(y, ref, atol=1e-5, rtol=1e-5)

    # Also exercise a ragged shape to confirm the M-padding / tiling paths.
    x2 = jax.random.normal(kx, (3, 37, input_size), jnp.float32)
    y2 = jax.block_until_ready(lsd_forward(x2, weight, bias))
    ref2 = x2 @ weight.T + bias
    ref2 = ref2 * jax.nn.sigmoid(ref2)
    assert y2.shape == (3, 37, output_size)
    assert jnp.allclose(y2, ref2, atol=1e-5, rtol=1e-5)

    print("KERNEL_OK")
</pallas_src>

<mosaic_0001>
module attributes {stable_mosaic.version = 11 : i64} {
  func.func @_lsd_kernel(%arg0: i32, %arg1: i32, %arg2: i32, %arg3: memref<1xi32, #tpu.memory_space<smem>>, %arg4: memref<16x32xf32, #tpu.memory_space<vmem>>, %arg5: memref<64x32xf32, #tpu.memory_space<vmem>>, %arg6: memref<1x64xf32, #tpu.memory_space<vmem>>, %arg7: memref<16x64xf32, #tpu.memory_space<vmem>>, %arg8: memref<16x64xf32, #tpu.memory_space<vmem>>) attributes {dimension_semantics = [#tpu.dimension_semantics<parallel>, #tpu.dimension_semantics<parallel>, #tpu.dimension_semantics<arbitrary>], iteration_bounds = array<i64: 1, 1, 1>, scalar_prefetch = 1 : i64, scratch_operands = 1 : i64, tpu.core_type = #tpu.core_type<tc>, window_params = [{transform_indices = @transform_0, window_bounds = array<i64: 16, 32>}, {transform_indices = @transform_1, window_bounds = array<i64: 64, 32>}, {transform_indices = @transform_2, window_bounds = array<i64: 1, 64>}, {transform_indices = @transform_3, window_bounds = array<i64: 16, 64>}]} {
    %c0_i32 = arith.constant 0 : i32
    %0 = arith.cmpi eq, %arg2, %c0_i32 : i32
    %1 = arith.extui %0 : i1 to i32
    %c0_i32_0 = arith.constant 0 : i32
    %2 = arith.cmpi ne, %1, %c0_i32_0 : i32
    scf.if %2 {
      %c0_10 = arith.constant 0 : index
      %c0_11 = arith.constant 0 : index
      %12 = vector.load %arg6[%c0_10, %c0_11] : memref<1x64xf32, #tpu.memory_space<vmem>>, vector<1x64xf32>
      %13 = vector.shape_cast %12 : vector<1x64xf32> to vector<1x64xf32>
      %14 = vector.broadcast %13 : vector<1x64xf32> to vector<16x64xf32>
      %c0_12 = arith.constant 0 : index
      %c0_13 = arith.constant 0 : index
      %15 = vector.load %arg8[%c0_12, %c0_13] : memref<16x64xf32, #tpu.memory_space<vmem>>, vector<16x64xf32>
      tpu.vector_store %arg8[%c0_12, %c0_13], %14 {strides = array<i32>} : memref<16x64xf32, #tpu.memory_space<vmem>>, vector<16x64xf32>,
    } else {
    }
    %c0 = arith.constant 0 : index
    %c0_1 = arith.constant 0 : index
    %3 = vector.load %arg8[%c0, %c0_1] : memref<16x64xf32, #tpu.memory_space<vmem>>, vector<16x64xf32>
    %c0_2 = arith.constant 0 : index
    %c0_3 = arith.constant 0 : index
    %4 = vector.load %arg4[%c0_2, %c0_3] : memref<16x32xf32, #tpu.memory_space<vmem>>, vector<16x32xf32>
    %c0_4 = arith.constant 0 : index
    %c0_5 = arith.constant 0 : index
    %5 = vector.load %arg5[%c0_4, %c0_5] : memref<64x32xf32, #tpu.memory_space<vmem>>, vector<64x32xf32>
    %cst = arith.constant dense<0.000000e+00> : vector<16x64xf32>
    %6 = tpu.matmul %4, %5, %cst {dimension_numbers = #tpu.dot_dimension_numbers<[1], [1], [0], [0], [0, 0, 1, 0], [], []>} : vector<16x32xf32>, vector<64x32xf32>, vector<16x64xf32> -> vector<16x64xf32>
    %7 = arith.addf %3, %6 : vector<16x64xf32>
    %c0_6 = arith.constant 0 : index
    %c0_7 = arith.constant 0 : index
    %8 = vector.load %arg8[%c0_6, %c0_7] : memref<16x64xf32, #tpu.memory_space<vmem>>, vector<16x64xf32>
    tpu.vector_store %arg8[%c0_6, %c0_7], %7 {strides = array<i32>} : memref<16x64xf32, #tpu.memory_space<vmem>>, vector<16x64xf32>,
    %c0_i32_8 = arith.constant 0 : i32
    %9 = arith.cmpi eq, %arg2, %c0_i32_8 : i32
    %10 = arith.extui %9 : i1 to i32
    %c0_i32_9 = arith.constant 0 : i32
    %11 = arith.cmpi ne, %10, %c0_i32_9 : i32
    scf.if %11 {
      %c0_10 = arith.constant 0 : index
      %c0_11 = arith.constant 0 : index
      %12 = vector.load %arg8[%c0_10, %c0_11] : memref<16x64xf32, #tpu.memory_space<vmem>>, vector<16x64xf32>
      %13 = arith.negf %12 : vector<16x64xf32>
      %14 = math.exp %13 : vector<16x64xf32>
      %cst_12 = arith.constant 1.000000e+00 : f32
      %15 = vector.broadcast %cst_12 : f32 to vector<16x64xf32>
      %16 = arith.addf %15, %14 : vector<16x64xf32>
      %17 = arith.divf %15, %16 : vector<16x64xf32>
      %18 = arith.mulf %12, %17 : vector<16x64xf32>
      %c0_13 = arith.constant 0 : index
      %c0_14 = arith.constant 0 : index
      %19 = vector.load %arg7[%c0_13, %c0_14] : memref<16x64xf32, #tpu.memory_space<vmem>>, vector<16x64xf32>
      tpu.vector_store %arg7[%c0_13, %c0_14], %18 {strides = array<i32>} : memref<16x64xf32, #tpu.memory_space<vmem>>, vector<16x64xf32>,
    } else {
    }
    return
  }
  func.func @transform_0(%arg0: i32, %arg1: i32, %arg2: i32, %arg3: memref<1xi32, #tpu.memory_space<smem>>) -> (i32, i32) {
    %c0_i32 = arith.constant 0 : i32
    return %arg0, %arg2 : i32, i32
  }
  func.func @transform_1(%arg0: i32, %arg1: i32, %arg2: i32, %arg3: memref<1xi32, #tpu.memory_space<smem>>) -> (i32, i32) {
    %c0_i32 = arith.constant 0 : i32
    return %arg1, %arg2 : i32, i32
  }
  func.func @transform_2(%arg0: i32, %arg1: i32, %arg2: i32, %arg3: memref<1xi32, #tpu.memory_space<smem>>) -> (i32, i32) {
    %c0_i32 = arith.constant 0 : i32
    %c0_i32_0 = arith.constant 0 : i32
    return %c0_i32, %arg1 : i32, i32
  }
  func.func @transform_3(%arg0: i32, %arg1: i32, %arg2: i32, %arg3: memref<1xi32, #tpu.memory_space<smem>>) -> (i32, i32) {
    %c0_i32 = arith.constant 0 : i32
    return %arg0, %arg1 : i32, i32
  }
}

</mosaic_0001>

<llo_original>
// kernel: tpu_custom_call.1
$region0: #{tpu_custom_call.1}
  #allocation0 [shape = 'u32[]', space=smem, size = 0x4, offset = 0x4, fixed_abs, tag = 'smem constant byte address 0x4 - core index']
  #allocation1 [shape = 'u32[144,128]{1,0:T(1,128)}', space=vmem, size = 0x12000, scoped, tag = 'internal scratch']
  #allocation2 [shape = 'f32[16,64]{1,0:T(8,128)}', space=vmem, size = 0x2000, scoped, tag = 'scratch operand']
  #allocation3 [shape = 's32[1]{0}', space=sflag, size = 0x4, scoped, tag = 'scoped memory for tpu_custom_call.1']
  #allocation4 [shape = 's32[1]{0:T(128)S(6)}', space=smem, size = 0x200, scoped, tag = 'prefetched SMEM operand 0']
  %s0 = inlined_call_operand.<no memory space> [shape: s32[1], index: 0, kind: input, shape index: {}]
  %s1 = inlined_call_operand.vmem [shape: f32[16,32], index: 1, kind: input, shape index: {}]
  %s2 = inlined_call_operand.vmem [shape: f32[64,32], index: 2, kind: input, shape index: {}]
  %s3 = inlined_call_operand.vmem [shape: f32[1,64], index: 3, kind: input, shape index: {}]
  %s4 = inlined_call_operand.hbm [shape: f32[16,64], index: 4, kind: output, shape index: {}]
  %s5 = sld [smem:[#allocation0]]
  $region30: #{tpu_custom_call.1} parent=0
    _
  %s7 = ssub.s32 1, %s5
  %s8 = scalar_select 0, %s7, %s5
  %9 = sst [smem:[#allocation4]] %s0
  $region1: #{tpu_custom_call.1} parent=0
    #allocation5 [shape = 'u8[8192]{0}', space=vmem, size = 0x2000, scoped, tag = 'output window, operand 0, single buffered']
    #allocation6 [shape = 's32[1]{0}', space=sflag, size = 0x4, scoped, tag = 'scoped memory for tpu_custom_call.1']
    %10 = vsyncpa [#allocation6], 0
    // Predicated region
    $region2: #{tpu_custom_call.1} parent=1 // pred_check
      _
    $region3: #{tpu_custom_call.1} parent=1 // pred_check_branch
      %12 = sbr.rel (0) target = $region5
    $region4: #{tpu_custom_call.1} parent=1 // pred_region
      _
    $region5: #{tpu_custom_call.1} parent=1 // pred_fallthru
      _
    // Predicated region
    $region6: #{tpu_custom_call.1} parent=1 // pred_check
      _
    $region7: #{tpu_custom_call.1} parent=1 // pred_check_branch
      %14 = sbr.rel (0) target = $region9
    $region8: #{tpu_custom_call.1} parent=1 // pred_region
      _
    $region9: #{tpu_custom_call.1} parent=1 // pred_fallthru
      _
    // Predicated region
    $region10: #{tpu_custom_call.1} parent=1 // pred_check
      _
    $region11: #{tpu_custom_call.1} parent=1 // pred_check_branch
      %16 = sbr.rel (0) target = $region13
    $region12: #{tpu_custom_call.1} parent=1 // pred_region
      _
    $region13: #{tpu_custom_call.1} parent=1 // pred_fallthru
      _
    %p17 = scmp.eq.s32.totalorder 0, 0
    // Predicated region
    $region14: #{tpu_custom_call.1} parent=1 // pred_check
      %p18 = pneg %p17
    $region15: #{tpu_custom_call.1} parent=1 // pred_check_branch
      %20 = sbr.rel (%p18) target = $region17
    $region16: #{tpu_custom_call.1} parent=1 // pred_region
      %v21 = vld [vmem:[%s3] sm:$0x1]
      %v23 = vlaneseq
      %v24 = vshrl.u32 %v23, 7
      %v25 = vsub.s32 0, %v24
      %v26 = vrot.slane %v21, %v25
      %vm28 = vcmask 523264
      %29 = vst.msk [vmem:[#allocation2] sm:$0xff] %vm28, %v26
      %30 = vst.msk [vmem:[#allocation2 + $0x8] sm:$0xff] %vm28, %v26
    $region17: #{tpu_custom_call.1} parent=1 // pred_fallthru
      _
    %v31 = vld [vmem:[#allocation2] sm:$0xff]
    %v32 = vld [vmem:[#allocation2 + $0x8] sm:$0xff]
    %v33 = vld [vmem:[%s1] sm:$0xff]
    %v34 = vld [vmem:[%s1 + $0x8] sm:$0xff]
    %v35 = vld [vmem:[%s2] sm:$0xff]
    %v36 = vld [vmem:[%s2 + $0x8] sm:$0xff]
    %v37 = vld [vmem:[%s2 + $0x10] sm:$0xff]
    %v38 = vld [vmem:[%s2 + $0x18] sm:$0xff]
    %v39 = vld [vmem:[%s2 + $0x20] sm:$0xff]
    %v40 = vld [vmem:[%s2 + $0x28] sm:$0xff]
    %v41 = vld [vmem:[%s2 + $0x30] sm:$0xff]
    %v42 = vld [vmem:[%s2 + $0x38] sm:$0xff]
    %vm43 = vcmask 261120
    %v45 = vsel %vm43, %v33, 0
    %v48 = vsel %vm43, %v34, 0
    %v51 = vsel %vm43, %v35, 0
    %v54 = vsel %vm43, %v36, 0
    %v57 = vsel %vm43, %v37, 0
    %v60 = vsel %vm43, %v38, 0
    %v63 = vsel %vm43, %v39, 0
    %v66 = vsel %vm43, %v40, 0
    %v69 = vsel %vm43, %v41, 0
    %v72 = vsel %vm43, %v42, 0
    %74 = vmatprep.subr.mxu0 0.0
    %75 = vmatpush1.xpose.msra.mxu0 %v51
    %76 = vmatprep.subr.mxu0 0.0
    %77 = vmatpush1.xpose.msra.mxu0 %v54
    %78 = vmatprep.subr.mxu0 0.0
    %79 = vmatpush1.xpose.msra.mxu0 %v57
    %80 = vmatprep.subr.mxu0 0.0
    %81 = vmatpush1.xpose.msra.mxu0 %v60
    %82 = vmatprep.subr.mxu0 0.0
    %83 = vmatpush1.xpose.msra.mxu0 %v63
    %84 = vmatprep.subr.mxu0 0.0
    %85 = vmatpush1.xpose.msra.mxu0 %v66
    %86 = vmatprep.subr.mxu0 0.0
    %87 = vmatpush1.xpose.msra.mxu0 %v69
    %88 = vmatprep.subr.mxu0 0.0
    %89 = vmatpush1.xpose.msra.mxu0 %v72
    %90 = vmatprep.subr.mxu0 0.0
    %91 = vmatpush1.xpose.msra.mxu0 0.0
    %92 = vmatprep.subr.mxu0 0.0
    %93 = vmatpush1.xpose.msra.mxu0 0.0
    %94 = vmatprep.subr.mxu0 0.0
    %95 = vmatpush1.xpose.msra.mxu0 0.0
    %96 = vmatprep.subr.mxu0 0.0
    %97 = vmatpush1.xpose.msra.mxu0 0.0
    %98 = vmatprep.subr.mxu0 0.0
    %99 = vmatpush1.xpose.msra.mxu0 0.0
    %100 = vmatprep.subr.mxu0 0.0
    %101 = vmatpush1.xpose.msra.mxu0 0.0
    %102 = vmatprep.subr.mxu0 0.0
    %103 = vmatpush1.xpose.msra.mxu0 0.0
    %104 = vmatprep.subr.mxu0 0.0
    %105 = vmatpush1.xpose.msra.mxu0 0.0
    %106 = vmatprep.subr.mxu0 0.0
    %107 = vmatpush1.xpose.msra.mxu0 0.0
    %108 = vmatprep.subr.mxu0 0.0
    %109 = vmatpush1.xpose.msra.mxu0 0.0
    %110 = vmatprep.subr.mxu0 0.0
    %111 = vmatpush1.xpose.msra.mxu0 0.0
    %112 = vmatprep.subr.mxu0 0.0
    %113 = vmatpush1.xpose.msra.mxu0 0.0
    %114 = vmatprep.subr.mxu0 0.0
    %115 = vmatpush1.xpose.msra.mxu0 0.0
    %116 = vmatprep.subr.mxu0 0.0
    %117 = vmatpush1.xpose.msra.mxu0 0.0
    %118 = vmatprep.subr.mxu0 0.0
    %119 = vmatpush1.xpose.msra.mxu0 0.0
    %120 = vmatprep.subr.mxu0 0.0
    %121 = vmatpush1.xpose.msra.mxu0 0.0
    %122 = vmatprep.subr.mxu0 0.0
    %123 = vmatpush1.xpose.msra.mxu0 0.0
    %124 = vmatprep.subr.mxu0 0.0
    %125 = vmatpush1.xpose.msra.mxu0 0.0
    %126 = vmatprep.subr.mxu0 0.0
    %127 = vmatpush1.xpose.msra.mxu0 0.0
    %128 = vmatprep.subr.mxu0 0.0
    %129 = vmatpush1.xpose.msra.mxu0 0.0
    %130 = vmatprep.subr.mxu0 0.0
    %131 = vmatpush1.xpose.msra.mxu0 0.0
    %132 = vmatprep.subr.mxu0 0.0
    %133 = vmatpush1.xpose.msra.mxu0 0.0
    %134 = vmatprep.subr.mxu0 0.0
    %135 = vmatpush1.xpose.msra.mxu0 0.0
    %136 = vmatprep.subr.mxu0 0.0
    %137 = vmatpush1.xpose.msra.mxu0 0.0
    %138 = vmatprep.mubr.f32.mxu0 0.0
    %139 = vmatmul.mubr.f32.gmra.mrb[0].mxu0 %v45
    %v140 = vpop.f32.mrb[0].mxu0
    %v141 = vadd.f32 0.0, %v140
    %v142 = vpop.f32.mrb[0].mxu0
    %143 = vmatprep.mubr.f32.mxu0 0.0
    %144 = vmatmul.mubr.f32.gmra.mrb[0].mxu0 %v48
    %v145 = vpop.f32.mrb[0].mxu0
    %v146 = vadd.f32 0.0, %v145
    %v147 = vpop.f32.mrb[0].mxu0
    %148 = vdwg.mxu0
    %v149 = vadd.f32 %v31, %v141
    %v150 = vadd.f32 %v32, %v146
    %vm151 = vcmask 523264
    %152 = vst.msk [vmem:[#allocation2] sm:$0xff] %vm151, %v149
    %153 = vst.msk [vmem:[#allocation2 + $0x8] sm:$0xff] %vm151, %v150
    // Predicated region
    $region18: #{tpu_custom_call.1} parent=1 // pred_check
      %p154 = pneg %p17
    $region19: #{tpu_custom_call.1} parent=1 // pred_check_branch
      %156 = sbr.rel (%p154) target = $region21
    $region20: #{tpu_custom_call.1} parent=1 // pred_region
      %v157 = vld [vmem:[#allocation2] sm:$0xff]
      %v158 = vld [vmem:[#allocation2 + $0x8] sm:$0xff]
      %v159 = vxor.u32 %v157, 2147483648
      %v160 = vxor.u32 %v158, 2147483648
      %v161 = vmul.f32 %v159, 1.442695
      %v162 = vpow.pop %v161
      %v163 = vmul.f32 %v160, 1.442695
      %v164 = vpow.pop %v163
      %v165 = vadd.f32 %v162, 1.0
      %v166 = vadd.f32 %v164, 1.0
      %v167 = vrcp.pop %v165
      %v168 = vmul.f32 1.0, %v167
      %v169 = vrcp.pop %v166
      %v170 = vmul.f32 1.0, %v169
      %v171 = vmul.f32 %v157, %v168
      %v172 = vmul.f32 %v158, %v170
      %173 = vst.msk [vmem:[#allocation5] sm:$0xff] %vm151, %v171
      %174 = vst.msk [vmem:[#allocation5 + $0x8] sm:$0xff] %vm151, %v172
    $region21: #{tpu_custom_call.1} parent=1 // pred_fallthru
      _
    // Predicated region
    $region22: #{tpu_custom_call.1} parent=1 // pred_check
      _
    $region23: #{tpu_custom_call.1} parent=1 // pred_check_branch
      %176 = sbr.rel (0) target = $region25
    $region24: #{tpu_custom_call.1} parent=1 // pred_region
      %s178 = ssub.s32 256, 256
      %179 = vsyncadd [#allocation6], %s178
      %s180 = sshll.u32 [#allocation5], 4
      %s181 = int_to_ptr.vmem [resolvable:$true] %s180
      %186 = dma.vmem_to_hbm [thread:$0]  %s181, 256, %s4, [#allocation6], 128, 128, 8
    $region25: #{tpu_custom_call.1} parent=1 // pred_fallthru
      _
    // Predicated region
    $region26: #{tpu_custom_call.1} parent=1 // pred_check
      _
    $region27: #{tpu_custom_call.1} parent=1 // pred_check_branch
      %188 = sbr.rel (0) target = $region29
    $region28: #{tpu_custom_call.1} parent=1 // pred_region
      %189 = dma.done [#allocation6], 256
    $region29: #{tpu_custom_call.1} parent=1 // pred_fallthru
      _
    %190 = vsyncpa [#allocation6], 1

</llo_original>
